<compile_context>
chip_gen: v7x
topology: tpu7x:2x2x1
jax: 0.10.0
libtpu: 0.0.40
codegen_flags: <defaults>
</compile_context>

<pallas_src>
import math
import numpy as np
import jax
import jax.numpy as jnp
from jax.experimental import pallas as pl
from jax.experimental.pallas import tpu as pltpu  # noqa: F401  (kept for parity / future grid use)

LN_EPS = 1e-5  # PyTorch nn.LayerNorm default eps


# ----------------------------------------------------------------------------
# Positional encoding buffer (deterministic formula -> plain numpy glue)
# ----------------------------------------------------------------------------
def make_pe(max_len, d_model, scale=0.1):
    position = np.arange(max_len, dtype=np.float32)[:, None]
    div_term = np.exp(
        np.arange(0, d_model, 2, dtype=np.float32) * -(math.log(10000.0) / d_model)
    )
    pe = np.zeros((max_len, d_model), np.float32)
    pe[:, 0::2] = np.sin(position * div_term) * scale
    pe[:, 1::2] = np.cos(position * div_term) * scale
    return pe


# ----------------------------------------------------------------------------
# Single fused kernel: PE add + ONE packed projection matmul + LayerNorm(K) +
# per-class attention (sublane-sliced K/V) + prototype + squared-distance.
# ----------------------------------------------------------------------------
def make_fused_kernel(n_s, n_q, n_classes, k_bs, T, Din, Dout):
    inv_sqrt_d = 1.0 / math.sqrt(Dout)
    inv_dist_scale = 1.0 / math.sqrt(Dout * T)
    seg = k_bs * T          # support rows per class (multiple of 8 -> cheap sublane slice)
    s_rows = n_s * T
    total_rows = (n_s + n_q) * T

    def kernel(x_ref, pe_ref, w_ref, b_ref, g_ref, beta_ref, out_ref):
        # ---- PE broadcast-add in-kernel: x (Ns+Nq, T, Din), pe (T, Din) ----
        xp = x_ref[...] + pe_ref[...][None, :, :]
        xp2 = xp.reshape(total_rows, Din)                     # merge leading dims

        # ---- ONE packed projection matmul: RHS = [Wsk|Wsv|Wqk|Wqv] (Din, 4D) ----
        # bf16 operands, f32 accumulation.  4*Dout = 128 fills the lane dim.
        proj = jnp.dot(xp2.astype(jnp.bfloat16), w_ref[...],
                       preferred_element_type=jnp.float32) + b_ref[...]

        s_proj = proj[:s_rows]                                # sublane slice (cheap)
        q_proj = proj[s_rows:]
        s_k = s_proj[:, 0:Dout]                               # static lane quadrants
        s_v = s_proj[:, Dout:2 * Dout]
        q_k = q_proj[:, 2 * Dout:3 * Dout]
        q_v = q_proj[:, 3 * Dout:4 * Dout]                    # stays f32

        def layernorm(y):
            mean = jnp.mean(y, axis=-1, keepdims=True)
            var = jnp.mean((y - mean) ** 2, axis=-1, keepdims=True)
            return (y - mean) * jax.lax.rsqrt(var + LN_EPS) * g_ref[...] + beta_ref[...]

        s_k = layernorm(s_k)
        q_k = layernorm(q_k)

        # fold 1/sqrt(D) into q_k once; cast score/proto operands to bf16 once.
        q_k_bf = (q_k * inv_sqrt_d).astype(jnp.bfloat16)      # (Nq*T, D)
        s_k_bf = s_k.astype(jnp.bfloat16)                     # (Ns*T, D)
        s_v_bf = s_v.astype(jnp.bfloat16)                     # (Ns*T, D)

        for c in range(n_classes):                            # small & static -> unrolled
            s_k_c = s_k_bf[c * seg:(c + 1) * seg]             # sublane row-slice
            s_v_c = s_v_bf[c * seg:(c + 1) * seg]
            sc = jax.lax.dot_general(q_k_bf, s_k_c, (((1,), (1,)), ((), ())),
                                     preferred_element_type=jnp.float32)  # (Nq*T, seg)
            m = jnp.max(sc, axis=-1, keepdims=True)
            e = jnp.exp(sc - m)
            denom = jnp.sum(e, axis=-1, keepdims=True)
            # deferred softmax normalization: scale the prototype, not e.
            proto = jnp.dot(e.astype(jnp.bfloat16), s_v_c,
                            preferred_element_type=jnp.float32)           # (Nq*T, D)
            proto = proto * pl.reciprocal(denom, approx=True)
            diff = q_v - proto
            sq = diff * diff
            per_row = jnp.sum(sq, axis=-1, keepdims=True)                 # (Nq*T, 1) lane reduce
            per_q = jnp.sum(per_row.reshape(n_q, T, 1), axis=1)           # (Nq, 1)  sublane reduce
            out_ref[:, c:c + 1] = -per_q * inv_dist_scale                 # direct column store

    return kernel


# ----------------------------------------------------------------------------
# CNN_TRX forward (method='none' path)
# ----------------------------------------------------------------------------
def cnn_trx_forward(params, context_images, context_labels, target_images,
                    target_labels, args):
    assert args.method == 'none'
    n_q = int(target_labels.shape[0])
    n_support, T, Din = context_images.shape
    Dout = args.trans_linear_out_dim
    # TODO(synk): nn.Dropout(trans_dropout) is treated as identity (eval mode).

    # TemporalCrossTransformer is built with seq_len=100 -> PE max_len = 150
    pe = jnp.asarray(make_pe(int(100 * 1.5), Din)[:T])        # (T, Din) — single buffer

    labels_np = np.asarray(context_labels)
    unique_labels = np.unique(labels_np)                      # sorted, mirrors torch.unique
    # TODO(synk): assumes balanced shots per class so the grouped support slab
    # is regular [n_classes * k_bs * T, Din] (torch allows ragged k_bs).
    per_class_idx = [np.where(labels_np == c)[0] for c in unique_labels]
    k_bs = len(per_class_idx[0])
    n_classes = len(unique_labels)
    perm = np.concatenate(per_class_idx)

    # Host glue: [support grouped by class ; queries] as ONE 3-D slab; the
    # per-clip PE is broadcast-added inside the kernel (no host tiling).
    x_all = jnp.concatenate([context_images[perm], target_images], axis=0)  # (Ns+Nq, T, Din)

    # Pack all four projection weights side by side -> one matmul, 4*Dout lanes.
    w_all = jnp.concatenate([params['w_sk'], params['w_sv'],
                             params['w_qk'], params['w_qv']],
                            axis=1).astype(jnp.bfloat16)      # (Din, 4*Dout) bf16
    b_all = jnp.concatenate([params['b_sk'], params['b_sv'],
                             params['b_qk'], params['b_qv']]).reshape(1, 4 * Dout)
    g = params['ln_g'].reshape(1, Dout)
    b = params['ln_b'].reshape(1, Dout)

    kernel = make_fused_kernel(n_support, n_q, n_classes, k_bs, T, Din, Dout)
    # Gridless: the whole episode fits in VMEM, so every input is a single
    # full-array VMEM block (default BlockSpec) and there is exactly one kernel
    # invocation — no pipeline overhead, no intermediate HBM round trips.
    dist = pl.pallas_call(
        kernel,
        out_shape=jax.ShapeDtypeStruct((n_q, n_classes), jnp.float32),
    )(x_all, pe, w_all, b_all, g, b)

    all_logits = jnp.zeros((n_q, args.way), jnp.float32)
    all_logits = all_logits.at[:, unique_labels.astype(np.int32)].set(dist)
    return all_logits


# ----------------------------------------------------------------------------
# Pure-JAX reference mirroring the torch code (f32), for correctness check
# ----------------------------------------------------------------------------
def reference_forward(p, ctx_x, ctx_lab, tgt_x, args, pe):
    n_q, T = tgt_x.shape[0], ctx_x.shape[1]
    Dout = args.trans_linear_out_dim

    def ln(x):
        mean = x.mean(-1, keepdims=True)
        var = ((x - mean) ** 2).mean(-1, keepdims=True)
        return (x - mean) / jnp.sqrt(var + LN_EPS) * p['ln_g'] + p['ln_b']

    ss = ctx_x + pe[None, :T]
    qq = tgt_x + pe[None, :T]
    s_ks = ln(ss @ p['w_sk'] + p['b_sk'])
    q_ks = ln(qq @ p['w_qk'] + p['b_qk'])
    s_vs = ss @ p['w_sv'] + p['b_sv']
    q_vs = qq @ p['w_qv'] + p['b_qv']

    labels_np = np.asarray(ctx_lab)
    out = np.zeros((n_q, args.way), np.float32)
    for c in np.unique(labels_np):
        idx = np.where(labels_np == c)[0]
        class_k = s_ks[idx]
        class_v = s_vs[idx]
        k_bs = class_k.shape[0]
        scores = jnp.matmul(q_ks[:, None], jnp.swapaxes(class_k, -2, -1)) / math.sqrt(Dout)
        scores = jnp.transpose(scores, (0, 2, 1, 3)).reshape(n_q, T, -1)
        scores = jax.nn.softmax(scores, axis=-1)
        scores = scores.reshape(n_q, T, k_bs, T).transpose(0, 2, 1, 3)
        proto = jnp.matmul(scores, class_v).sum(axis=1)
        diff = q_vs - proto
        dist = jnp.linalg.norm(diff.reshape(n_q, -1), axis=-1) ** 2
        dist = -dist / math.sqrt(Dout * T)
        out[:, int(c)] = np.asarray(dist)
    return jnp.asarray(out)


# ----------------------------------------------------------------------------
if __name__ == "__main__":
    class Args:
        pass

    args = Args()
    args.method = 'none'
    args.trans_linear_in_dim = 32
    args.trans_linear_out_dim = 32
    args.trans_dropout = 0.0
    args.way = 3

    shots = 2
    T = 8
    n_support = args.way * shots
    n_q = 4
    Din, Dout = args.trans_linear_in_dim, args.trans_linear_out_dim

    key = jax.random.PRNGKey(0)
    keys = jax.random.split(key, 10)
    bound = 1.0 / math.sqrt(Din)

    def u(k, shape):
        return jax.random.uniform(k, shape, jnp.float32, -bound, bound)

    params = {
        'w_sk': u(keys[0], (Din, Dout)), 'b_sk': u(keys[1], (Dout,)),
        'w_sv': u(keys[2], (Din, Dout)), 'b_sv': u(keys[3], (Dout,)),
        'w_qk': u(keys[4], (Din, Dout)), 'b_qk': u(keys[5], (Dout,)),
        'w_qv': u(keys[6], (Din, Dout)), 'b_qv': u(keys[7], (Dout,)),
        'ln_g': jnp.ones((Dout,), jnp.float32),
        'ln_b': jnp.zeros((Dout,), jnp.float32),
    }

    context_images = jax.random.normal(keys[8], (n_support, T, Din), jnp.float32)
    target_images = jax.random.normal(keys[9], (n_q, T, Din), jnp.float32)
    context_labels = jnp.asarray(sorted(list(range(args.way)) * shots), jnp.int32)
    target_labels = jnp.zeros((n_q,), jnp.int32)  # only its length is used

    logits = cnn_trx_forward(params, context_images, context_labels,
                             target_images, target_labels, args)
    logits = jax.block_until_ready(logits)

    pe = jnp.asarray(make_pe(int(100 * 1.5), Din)[:T])
    ref = reference_forward(params, context_images, context_labels,
                            target_images, args, pe)
    # bf16 MXU operands (+ approx reciprocal) vs. the f32 reference: tolerance
    # relaxed from 1e-3 to 2e-2 per the perf review; measured error is far below.
    np.testing.assert_allclose(np.asarray(logits), np.asarray(ref),
                               rtol=2e-2, atol=2e-2)
    print("KERNEL_OK")
</pallas_src>

<mosaic_0001>
module attributes {stable_mosaic.version = 11 : i64} {
  func.func @kernel(%arg0: memref<10x8x32xf32, #tpu.memory_space<vmem>>, %arg1: memref<8x32xf32, #tpu.memory_space<vmem>>, %arg2: memref<32x128xbf16, #tpu.memory_space<vmem>>, %arg3: memref<1x128xf32, #tpu.memory_space<vmem>>, %arg4: memref<1x32xf32, #tpu.memory_space<vmem>>, %arg5: memref<1x32xf32, #tpu.memory_space<vmem>>, %arg6: memref<4x3xf32, #tpu.memory_space<vmem>>) attributes {dimension_semantics = [], scalar_prefetch = 0 : i64, scratch_operands = 0 : i64, tpu.core_type = #tpu.core_type<tc>} {
    %c0 = arith.constant 0 : index
    %c0_0 = arith.constant 0 : index
    %c0_1 = arith.constant 0 : index
    %0 = vector.load %arg0[%c0, %c0_0, %c0_1] : memref<10x8x32xf32, #tpu.memory_space<vmem>>, vector<10x8x32xf32>
    %c0_2 = arith.constant 0 : index
    %c0_3 = arith.constant 0 : index
    %1 = vector.load %arg1[%c0_2, %c0_3] : memref<8x32xf32, #tpu.memory_space<vmem>>, vector<8x32xf32>
    %2 = vector.shape_cast %1 : vector<8x32xf32> to vector<1x8x32xf32>
    %3 = vector.broadcast %2 : vector<1x8x32xf32> to vector<10x8x32xf32>
    %4 = arith.addf %0, %3 : vector<10x8x32xf32>
    %5 = vector.shape_cast %4 : vector<10x8x32xf32> to vector<80x32xf32>
    %6 = arith.truncf %5 : vector<80x32xf32> to vector<80x32xbf16>
    %c0_4 = arith.constant 0 : index
    %c0_5 = arith.constant 0 : index
    %7 = vector.load %arg2[%c0_4, %c0_5] : memref<32x128xbf16, #tpu.memory_space<vmem>>, vector<32x128xbf16>
    %cst = arith.constant dense<0.000000e+00> : vector<80x128xf32>
    %8 = tpu.matmul %6, %7, %cst {dimension_numbers = #tpu.dot_dimension_numbers<[1], [0], [0], [1], [0, 0, 1, 1], [], []>} : vector<80x32xbf16>, vector<32x128xbf16>, vector<80x128xf32> -> vector<80x128xf32>
    %c0_6 = arith.constant 0 : index
    %c0_7 = arith.constant 0 : index
    %9 = vector.load %arg3[%c0_6, %c0_7] : memref<1x128xf32, #tpu.memory_space<vmem>>, vector<1x128xf32>
    %10 = vector.broadcast %9 : vector<1x128xf32> to vector<80x128xf32>
    %11 = arith.addf %8, %10 : vector<80x128xf32>
    %12 = vector.extract_strided_slice %11 {offsets = [0, 0], sizes = [48, 128], strides = [1, 1]} : vector<80x128xf32> to vector<48x128xf32>
    %13 = vector.extract_strided_slice %11 {offsets = [48, 0], sizes = [32, 128], strides = [1, 1]} : vector<80x128xf32> to vector<32x128xf32>
    %14 = vector.extract_strided_slice %12 {offsets = [0, 0], sizes = [48, 32], strides = [1, 1]} : vector<48x128xf32> to vector<48x32xf32>
    %15 = vector.extract_strided_slice %12 {offsets = [0, 32], sizes = [48, 32], strides = [1, 1]} : vector<48x128xf32> to vector<48x32xf32>
    %16 = vector.extract_strided_slice %13 {offsets = [0, 64], sizes = [32, 32], strides = [1, 1]} : vector<32x128xf32> to vector<32x32xf32>
    %17 = vector.extract_strided_slice %13 {offsets = [0, 96], sizes = [32, 32], strides = [1, 1]} : vector<32x128xf32> to vector<32x32xf32>
    %cst_8 = arith.constant dense<0.000000e+00> : vector<48xf32>
    %18 = vector.multi_reduction <add>, %14, %cst_8 [1] : vector<48x32xf32> to vector<48xf32>
    %19 = vector.shape_cast %18 : vector<48xf32> to vector<48x1xf32>
    %cst_9 = arith.constant 3.200000e+01 : f32
    %20 = vector.broadcast %cst_9 : f32 to vector<48x1xf32>
    %21 = arith.divf %19, %20 : vector<48x1xf32>
    %22 = vector.broadcast %21 : vector<48x1xf32> to vector<48x32xf32>
    %23 = arith.subf %14, %22 : vector<48x32xf32>
    %24 = arith.mulf %23, %23 : vector<48x32xf32>
    %cst_10 = arith.constant dense<0.000000e+00> : vector<48xf32>
    %25 = vector.multi_reduction <add>, %24, %cst_10 [1] : vector<48x32xf32> to vector<48xf32>
    %26 = vector.shape_cast %25 : vector<48xf32> to vector<48x1xf32>
    %cst_11 = arith.constant 3.200000e+01 : f32
    %27 = vector.broadcast %cst_11 : f32 to vector<48x1xf32>
    %28 = arith.divf %26, %27 : vector<48x1xf32>
    %29 = vector.broadcast %21 : vector<48x1xf32> to vector<48x32xf32>
    %30 = arith.subf %14, %29 : vector<48x32xf32>
    %cst_12 = arith.constant 9.99999974E-6 : f32
    %31 = vector.broadcast %cst_12 : f32 to vector<48x1xf32>
    %32 = arith.addf %28, %31 : vector<48x1xf32>
    %33 = math.rsqrt %32 : vector<48x1xf32>
    %34 = vector.broadcast %33 : vector<48x1xf32> to vector<48x32xf32>
    %35 = arith.mulf %30, %34 : vector<48x32xf32>
    %c0_13 = arith.constant 0 : index
    %c0_14 = arith.constant 0 : index
    %36 = vector.load %arg4[%c0_13, %c0_14] : memref<1x32xf32, #tpu.memory_space<vmem>>, vector<1x32xf32>
    %37 = vector.broadcast %36 : vector<1x32xf32> to vector<48x32xf32>
    %38 = arith.mulf %35, %37 : vector<48x32xf32>
    %c0_15 = arith.constant 0 : index
    %c0_16 = arith.constant 0 : index
    %39 = vector.load %arg5[%c0_15, %c0_16] : memref<1x32xf32, #tpu.memory_space<vmem>>, vector<1x32xf32>
    %40 = vector.broadcast %39 : vector<1x32xf32> to vector<48x32xf32>
    %41 = arith.addf %38, %40 : vector<48x32xf32>
    %cst_17 = arith.constant dense<0.000000e+00> : vector<32xf32>
    %42 = vector.multi_reduction <add>, %16, %cst_17 [1] : vector<32x32xf32> to vector<32xf32>
    %43 = vector.shape_cast %42 : vector<32xf32> to vector<32x1xf32>
    %cst_18 = arith.constant 3.200000e+01 : f32
    %44 = vector.broadcast %cst_18 : f32 to vector<32x1xf32>
    %45 = arith.divf %43, %44 : vector<32x1xf32>
    %46 = vector.broadcast %45 : vector<32x1xf32> to vector<32x32xf32>
    %47 = arith.subf %16, %46 : vector<32x32xf32>
    %48 = arith.mulf %47, %47 : vector<32x32xf32>
    %cst_19 = arith.constant dense<0.000000e+00> : vector<32xf32>
    %49 = vector.multi_reduction <add>, %48, %cst_19 [1] : vector<32x32xf32> to vector<32xf32>
    %50 = vector.shape_cast %49 : vector<32xf32> to vector<32x1xf32>
    %cst_20 = arith.constant 3.200000e+01 : f32
    %51 = vector.broadcast %cst_20 : f32 to vector<32x1xf32>
    %52 = arith.divf %50, %51 : vector<32x1xf32>
    %53 = vector.broadcast %45 : vector<32x1xf32> to vector<32x32xf32>
    %54 = arith.subf %16, %53 : vector<32x32xf32>
    %cst_21 = arith.constant 9.99999974E-6 : f32
    %55 = vector.broadcast %cst_21 : f32 to vector<32x1xf32>
    %56 = arith.addf %52, %55 : vector<32x1xf32>
    %57 = math.rsqrt %56 : vector<32x1xf32>
    %58 = vector.broadcast %57 : vector<32x1xf32> to vector<32x32xf32>
    %59 = arith.mulf %54, %58 : vector<32x32xf32>
    %c0_22 = arith.constant 0 : index
    %c0_23 = arith.constant 0 : index
    %60 = vector.load %arg4[%c0_22, %c0_23] : memref<1x32xf32, #tpu.memory_space<vmem>>, vector<1x32xf32>
    %61 = vector.broadcast %60 : vector<1x32xf32> to vector<32x32xf32>
    %62 = arith.mulf %59, %61 : vector<32x32xf32>
    %c0_24 = arith.constant 0 : index
    %c0_25 = arith.constant 0 : index
    %63 = vector.load %arg5[%c0_24, %c0_25] : memref<1x32xf32, #tpu.memory_space<vmem>>, vector<1x32xf32>
    %64 = vector.broadcast %63 : vector<1x32xf32> to vector<32x32xf32>
    %65 = arith.addf %62, %64 : vector<32x32xf32>
    %cst_26 = arith.constant 0.176776692 : f32
    %66 = vector.broadcast %cst_26 : f32 to vector<32x32xf32>
    %67 = arith.mulf %65, %66 : vector<32x32xf32>
    %68 = arith.truncf %67 : vector<32x32xf32> to vector<32x32xbf16>
    %69 = arith.truncf %41 : vector<48x32xf32> to vector<48x32xbf16>
    %70 = arith.truncf %15 : vector<48x32xf32> to vector<48x32xbf16>
    %71 = vector.extract_strided_slice %69 {offsets = [0, 0], sizes = [16, 32], strides = [1, 1]} : vector<48x32xbf16> to vector<16x32xbf16>
    %72 = vector.extract_strided_slice %70 {offsets = [0, 0], sizes = [16, 32], strides = [1, 1]} : vector<48x32xbf16> to vector<16x32xbf16>
    %cst_27 = arith.constant dense<0.000000e+00> : vector<32x16xf32>
    %73 = tpu.matmul %68, %71, %cst_27 {dimension_numbers = #tpu.dot_dimension_numbers<[1], [1], [0], [0], [0, 0, 1, 0], [], []>} : vector<32x32xbf16>, vector<16x32xbf16>, vector<32x16xf32> -> vector<32x16xf32>
    %cst_28 = arith.constant dense<0xFF800000> : vector<32xf32>
    %74 = vector.multi_reduction <maximumf>, %73, %cst_28 [1] : vector<32x16xf32> to vector<32xf32>
    %75 = vector.shape_cast %74 : vector<32xf32> to vector<32x1xf32>
    %76 = vector.broadcast %75 : vector<32x1xf32> to vector<32x16xf32>
    %77 = arith.subf %73, %76 : vector<32x16xf32>
    %78 = math.exp %77 : vector<32x16xf32>
    %cst_29 = arith.constant dense<0.000000e+00> : vector<32xf32>
    %79 = vector.multi_reduction <add>, %78, %cst_29 [1] : vector<32x16xf32> to vector<32xf32>
    %80 = vector.shape_cast %79 : vector<32xf32> to vector<32x1xf32>
    %81 = arith.truncf %78 : vector<32x16xf32> to vector<32x16xbf16>
    %cst_30 = arith.constant dense<0.000000e+00> : vector<32x32xf32>
    %82 = tpu.matmul %81, %72, %cst_30 {dimension_numbers = #tpu.dot_dimension_numbers<[1], [0], [0], [1], [0, 0, 1, 1], [], []>} : vector<32x16xbf16>, vector<16x32xbf16>, vector<32x32xf32> -> vector<32x32xf32>
    %83 = tpu.reciprocal %80 {approx = true} : vector<32x1xf32> -> vector<32x1xf32>
    %84 = vector.broadcast %83 : vector<32x1xf32> to vector<32x32xf32>
    %85 = arith.mulf %82, %84 : vector<32x32xf32>
    %86 = arith.subf %17, %85 : vector<32x32xf32>
    %87 = arith.mulf %86, %86 : vector<32x32xf32>
    %cst_31 = arith.constant dense<0.000000e+00> : vector<32xf32>
    %88 = vector.multi_reduction <add>, %87, %cst_31 [1] : vector<32x32xf32> to vector<32xf32>
    %89 = vector.shape_cast %88 : vector<32xf32> to vector<32x1xf32>
    %90 = vector.shape_cast %89 : vector<32x1xf32> to vector<4x8x1xf32>
    %cst_32 = arith.constant dense<0.000000e+00> : vector<4x1xf32>
    %91 = vector.multi_reduction <add>, %90, %cst_32 [1] : vector<4x8x1xf32> to vector<4x1xf32>
    %cst_33 = arith.constant 0.000000e+00 : f32
    %92 = vector.broadcast %cst_33 : f32 to vector<4x1xf32>
    %93 = arith.subf %92, %91 : vector<4x1xf32>
    %cst_34 = arith.constant 6.250000e-02 : f32
    %94 = vector.broadcast %cst_34 : f32 to vector<4x1xf32>
    %95 = arith.mulf %93, %94 : vector<4x1xf32>
    %c0_35 = arith.constant 0 : index
    %c0_36 = arith.constant 0 : index
    %96 = vector.load %arg6[%c0_35, %c0_36] : memref<4x3xf32, #tpu.memory_space<vmem>>, vector<4x1xf32>
    tpu.vector_store %arg6[%c0_35, %c0_36], %95 {strides = array<i32>} : memref<4x3xf32, #tpu.memory_space<vmem>>, vector<4x1xf32>,
    %97 = vector.extract_strided_slice %69 {offsets = [16, 0], sizes = [16, 32], strides = [1, 1]} : vector<48x32xbf16> to vector<16x32xbf16>
    %98 = vector.extract_strided_slice %70 {offsets = [16, 0], sizes = [16, 32], strides = [1, 1]} : vector<48x32xbf16> to vector<16x32xbf16>
    %cst_37 = arith.constant dense<0.000000e+00> : vector<32x16xf32>
    %99 = tpu.matmul %68, %97, %cst_37 {dimension_numbers = #tpu.dot_dimension_numbers<[1], [1], [0], [0], [0, 0, 1, 0], [], []>} : vector<32x32xbf16>, vector<16x32xbf16>, vector<32x16xf32> -> vector<32x16xf32>
    %cst_38 = arith.constant dense<0xFF800000> : vector<32xf32>
    %100 = vector.multi_reduction <maximumf>, %99, %cst_38 [1] : vector<32x16xf32> to vector<32xf32>
    %101 = vector.shape_cast %100 : vector<32xf32> to vector<32x1xf32>
    %102 = vector.broadcast %101 : vector<32x1xf32> to vector<32x16xf32>
    %103 = arith.subf %99, %102 : vector<32x16xf32>
    %104 = math.exp %103 : vector<32x16xf32>
    %cst_39 = arith.constant dense<0.000000e+00> : vector<32xf32>
    %105 = vector.multi_reduction <add>, %104, %cst_39 [1] : vector<32x16xf32> to vector<32xf32>
    %106 = vector.shape_cast %105 : vector<32xf32> to vector<32x1xf32>
    %107 = arith.truncf %104 : vector<32x16xf32> to vector<32x16xbf16>
    %cst_40 = arith.constant dense<0.000000e+00> : vector<32x32xf32>
    %108 = tpu.matmul %107, %98, %cst_40 {dimension_numbers = #tpu.dot_dimension_numbers<[1], [0], [0], [1], [0, 0, 1, 1], [], []>} : vector<32x16xbf16>, vector<16x32xbf16>, vector<32x32xf32> -> vector<32x32xf32>
    %109 = tpu.reciprocal %106 {approx = true} : vector<32x1xf32> -> vector<32x1xf32>
    %110 = vector.broadcast %109 : vector<32x1xf32> to vector<32x32xf32>
    %111 = arith.mulf %108, %110 : vector<32x32xf32>
    %112 = arith.subf %17, %111 : vector<32x32xf32>
    %113 = arith.mulf %112, %112 : vector<32x32xf32>
    %cst_41 = arith.constant dense<0.000000e+00> : vector<32xf32>
    %114 = vector.multi_reduction <add>, %113, %cst_41 [1] : vector<32x32xf32> to vector<32xf32>
    %115 = vector.shape_cast %114 : vector<32xf32> to vector<32x1xf32>
    %116 = vector.shape_cast %115 : vector<32x1xf32> to vector<4x8x1xf32>
    %cst_42 = arith.constant dense<0.000000e+00> : vector<4x1xf32>
    %117 = vector.multi_reduction <add>, %116, %cst_42 [1] : vector<4x8x1xf32> to vector<4x1xf32>
    %cst_43 = arith.constant 0.000000e+00 : f32
    %118 = vector.broadcast %cst_43 : f32 to vector<4x1xf32>
    %119 = arith.subf %118, %117 : vector<4x1xf32>
    %cst_44 = arith.constant 6.250000e-02 : f32
    %120 = vector.broadcast %cst_44 : f32 to vector<4x1xf32>
    %121 = arith.mulf %119, %120 : vector<4x1xf32>
    %c0_45 = arith.constant 0 : index
    %c1 = arith.constant 1 : index
    %122 = vector.load %arg6[%c0_45, %c1] : memref<4x3xf32, #tpu.memory_space<vmem>>, vector<4x1xf32>
    tpu.vector_store %arg6[%c0_45, %c1], %121 {strides = array<i32>} : memref<4x3xf32, #tpu.memory_space<vmem>>, vector<4x1xf32>,
    %123 = vector.extract_strided_slice %69 {offsets = [32, 0], sizes = [16, 32], strides = [1, 1]} : vector<48x32xbf16> to vector<16x32xbf16>
    %124 = vector.extract_strided_slice %70 {offsets = [32, 0], sizes = [16, 32], strides = [1, 1]} : vector<48x32xbf16> to vector<16x32xbf16>
    %cst_46 = arith.constant dense<0.000000e+00> : vector<32x16xf32>
    %125 = tpu.matmul %68, %123, %cst_46 {dimension_numbers = #tpu.dot_dimension_numbers<[1], [1], [0], [0], [0, 0, 1, 0], [], []>} : vector<32x32xbf16>, vector<16x32xbf16>, vector<32x16xf32> -> vector<32x16xf32>
    %cst_47 = arith.constant dense<0xFF800000> : vector<32xf32>
    %126 = vector.multi_reduction <maximumf>, %125, %cst_47 [1] : vector<32x16xf32> to vector<32xf32>
    %127 = vector.shape_cast %126 : vector<32xf32> to vector<32x1xf32>
    %128 = vector.broadcast %127 : vector<32x1xf32> to vector<32x16xf32>
    %129 = arith.subf %125, %128 : vector<32x16xf32>
    %130 = math.exp %129 : vector<32x16xf32>
    %cst_48 = arith.constant dense<0.000000e+00> : vector<32xf32>
    %131 = vector.multi_reduction <add>, %130, %cst_48 [1] : vector<32x16xf32> to vector<32xf32>
    %132 = vector.shape_cast %131 : vector<32xf32> to vector<32x1xf32>
    %133 = arith.truncf %130 : vector<32x16xf32> to vector<32x16xbf16>
    %cst_49 = arith.constant dense<0.000000e+00> : vector<32x32xf32>
    %134 = tpu.matmul %133, %124, %cst_49 {dimension_numbers = #tpu.dot_dimension_numbers<[1], [0], [0], [1], [0, 0, 1, 1], [], []>} : vector<32x16xbf16>, vector<16x32xbf16>, vector<32x32xf32> -> vector<32x32xf32>
    %135 = tpu.reciprocal %132 {approx = true} : vector<32x1xf32> -> vector<32x1xf32>
    %136 = vector.broadcast %135 : vector<32x1xf32> to vector<32x32xf32>
    %137 = arith.mulf %134, %136 : vector<32x32xf32>
    %138 = arith.subf %17, %137 : vector<32x32xf32>
    %139 = arith.mulf %138, %138 : vector<32x32xf32>
    %cst_50 = arith.constant dense<0.000000e+00> : vector<32xf32>
    %140 = vector.multi_reduction <add>, %139, %cst_50 [1] : vector<32x32xf32> to vector<32xf32>
    %141 = vector.shape_cast %140 : vector<32xf32> to vector<32x1xf32>
    %142 = vector.shape_cast %141 : vector<32x1xf32> to vector<4x8x1xf32>
    %cst_51 = arith.constant dense<0.000000e+00> : vector<4x1xf32>
    %143 = vector.multi_reduction <add>, %142, %cst_51 [1] : vector<4x8x1xf32> to vector<4x1xf32>
    %cst_52 = arith.constant 0.000000e+00 : f32
    %144 = vector.broadcast %cst_52 : f32 to vector<4x1xf32>
    %145 = arith.subf %144, %143 : vector<4x1xf32>
    %cst_53 = arith.constant 6.250000e-02 : f32
    %146 = vector.broadcast %cst_53 : f32 to vector<4x1xf32>
    %147 = arith.mulf %145, %146 : vector<4x1xf32>
    %c0_54 = arith.constant 0 : index
    %c2 = arith.constant 2 : index
    %148 = vector.load %arg6[%c0_54, %c2] : memref<4x3xf32, #tpu.memory_space<vmem>>, vector<4x1xf32>
    tpu.vector_store %arg6[%c0_54, %c2], %147 {strides = array<i32>} : memref<4x3xf32, #tpu.memory_space<vmem>>, vector<4x1xf32>,
    return
  }
}

</mosaic_0001>

<llo_original>
// kernel: tpu_custom_call.1
$region0: #{tpu_custom_call.1}
  #allocation0 [shape = 'u32[]', space=smem, size = 0x4, offset = 0x4, fixed_abs, tag = 'smem constant byte address 0x4 - core index']
  #allocation1 [shape = 'u32[144,128]{1,0:T(1,128)}', space=vmem, size = 0x12000, scoped, tag = 'internal scratch']
  %s0 = inlined_call_operand.hbm [shape: f32[10,8,32], index: 0, kind: input, shape index: {}]
  %s1 = inlined_call_operand.hbm [shape: f32[8,32], index: 1, kind: input, shape index: {}]
  %s2 = inlined_call_operand.hbm [shape: bf16[32,128], index: 2, kind: input, shape index: {}]
  %s3 = inlined_call_operand.vmem [shape: f32[1,128], index: 3, kind: input, shape index: {}]
  %s4 = inlined_call_operand.vmem [shape: f32[1,32], index: 4, kind: input, shape index: {}]
  %s5 = inlined_call_operand.vmem [shape: f32[1,32], index: 5, kind: input, shape index: {}]
  %s6 = inlined_call_operand.hbm [shape: f32[4,3], index: 6, kind: output, shape index: {}]
  %s7 = sld [smem:[#allocation0]]
  $region46: #{tpu_custom_call.1} parent=0
    _
  %s9 = ssub.s32 1, %s7
  %s10 = scalar_select 0, %s9, %s7
  $region1: #{tpu_custom_call.1} parent=0
    #allocation2 [shape = 'u8[40960]{0}', space=vmem, size = 0xa000, scoped, tag = 'input window, operand 0, single buffered']
    #allocation3 [shape = 's32[1]{0}', space=sflag, size = 0x4, scoped, tag = 'scoped memory for tpu_custom_call.1']
    #allocation4 [shape = 's32[1]{0}', space=sflag, size = 0x4, scoped, tag = 'scoped memory for tpu_custom_call.1']
    #allocation5 [shape = 'u8[4096]{0}', space=vmem, size = 0x1000, scoped, tag = 'input window, operand 1, single buffered']
    #allocation6 [shape = 's32[1]{0}', space=sflag, size = 0x4, scoped, tag = 'scoped memory for tpu_custom_call.1']
    #allocation7 [shape = 'u8[8192]{0}', space=vmem, size = 0x2000, scoped, tag = 'input window, operand 2, single buffered']
    #allocation8 [shape = 'u8[2048]{0}', space=vmem, size = 0x800, scoped, tag = 'output window, operand 0, single buffered']
    %11 = vsyncpa [#allocation3], 0
    %12 = vsyncpa [#allocation6], 0
    %13 = vsyncpa [#allocation4], 0
    // Predicated region
    $region2: #{tpu_custom_call.1} parent=1 // pred_check
      _
    $region3: #{tpu_custom_call.1} parent=1 // pred_check_branch
      %15 = sbr.rel (0) target = $region5
    $region4: #{tpu_custom_call.1} parent=1 // pred_region
      %s17 = ssub.s32 1280, 1280
      %18 = vsyncadd [#allocation3], %s17
      %s19 = sshll.u32 [#allocation2], 4
      %s20 = int_to_ptr.vmem [resolvable:$true] %s19
      %25 = dma.hbm_to_vmem [thread:$0]  %s0, 1280, %s20, [#allocation3], 128, 128, 8
    $region5: #{tpu_custom_call.1} parent=1 // pred_fallthru
      _
    // Predicated region
    $region6: #{tpu_custom_call.1} parent=1 // pred_check
      _
    $region7: #{tpu_custom_call.1} parent=1 // pred_check_branch
      %27 = sbr.rel (0) target = $region9
    $region8: #{tpu_custom_call.1} parent=1 // pred_region
      %s29 = ssub.s32 128, 128
      %30 = vsyncadd [#allocation6], %s29
      %s32 = sshll.u32 [#allocation5], 4
      %s33 = int_to_ptr.vmem [resolvable:$true] %s32
      %35 = dma.hbm_to_vmem [thread:$0]  %s1, 128, %s33, [#allocation6]
    $region9: #{tpu_custom_call.1} parent=1 // pred_fallthru
      _
    // Predicated region
    $region10: #{tpu_custom_call.1} parent=1 // pred_check
      _
    $region11: #{tpu_custom_call.1} parent=1 // pred_check_branch
      %37 = sbr.rel (0) target = $region13
    $region12: #{tpu_custom_call.1} parent=1 // pred_region
      %s39 = ssub.s32 256, 256
      %40 = vsyncadd [#allocation6], %s39
      %s41 = sshll.u32 [#allocation7], 4
      %s42 = int_to_ptr.vmem [resolvable:$true] %s41
      %47 = dma.hbm_to_vmem [thread:$0]  %s2, 256, %s42, [#allocation6], 64, 64, 4
    $region13: #{tpu_custom_call.1} parent=1 // pred_fallthru
      _
    // Predicated region
    $region14: #{tpu_custom_call.1} parent=1 // pred_check
      _
    $region15: #{tpu_custom_call.1} parent=1 // pred_check_branch
      %49 = sbr.rel (0) target = $region17
    $region16: #{tpu_custom_call.1} parent=1 // pred_region
      _
    $region17: #{tpu_custom_call.1} parent=1 // pred_fallthru
      _
    // Predicated region
    $region18: #{tpu_custom_call.1} parent=1 // pred_check
      _
    $region19: #{tpu_custom_call.1} parent=1 // pred_check_branch
      %51 = sbr.rel (0) target = $region21
    $region20: #{tpu_custom_call.1} parent=1 // pred_region
      _
    $region21: #{tpu_custom_call.1} parent=1 // pred_fallthru
      _
    // Predicated region
    $region22: #{tpu_custom_call.1} parent=1 // pred_check
      _
    $region23: #{tpu_custom_call.1} parent=1 // pred_check_branch
      %53 = sbr.rel (0) target = $region25
    $region24: #{tpu_custom_call.1} parent=1 // pred_region
      _
    $region25: #{tpu_custom_call.1} parent=1 // pred_fallthru
      _
    // Predicated region
    $region26: #{tpu_custom_call.1} parent=1 // pred_check
      _
    $region27: #{tpu_custom_call.1} parent=1 // pred_check_branch
      %55 = sbr.rel (0) target = $region29
    $region28: #{tpu_custom_call.1} parent=1 // pred_region
      %56 = dma.done [#allocation3], 1280
    $region29: #{tpu_custom_call.1} parent=1 // pred_fallthru
      _
    // Predicated region
    $region30: #{tpu_custom_call.1} parent=1 // pred_check
      _
    $region31: #{tpu_custom_call.1} parent=1 // pred_check_branch
      %58 = sbr.rel (0) target = $region33
    $region32: #{tpu_custom_call.1} parent=1 // pred_region
      %59 = dma.done [#allocation6], 128
    $region33: #{tpu_custom_call.1} parent=1 // pred_fallthru
      _
    // Predicated region
    $region34: #{tpu_custom_call.1} parent=1 // pred_check
      _
    $region35: #{tpu_custom_call.1} parent=1 // pred_check_branch
      %61 = sbr.rel (0) target = $region37
    $region36: #{tpu_custom_call.1} parent=1 // pred_region
      %62 = dma.done [#allocation6], 256
    $region37: #{tpu_custom_call.1} parent=1 // pred_fallthru
      _
    %v64 = vld [vmem:[#allocation2] sm:$0xff]
    %v65 = vld [vmem:[#allocation2 + $0x8] sm:$0xff]
    %v66 = vld [vmem:[#allocation2 + $0x10] sm:$0xff]
    %v67 = vld [vmem:[#allocation2 + $0x18] sm:$0xff]
    %v68 = vld [vmem:[#allocation2 + $0x20] sm:$0xff]
    %v69 = vld [vmem:[#allocation2 + $0x28] sm:$0xff]
    %v70 = vld [vmem:[#allocation2 + $0x30] sm:$0xff]
    %v71 = vld [vmem:[#allocation2 + $0x38] sm:$0xff]
    %v72 = vld [vmem:[#allocation2 + $0x40] sm:$0xff]
    %v73 = vld [vmem:[#allocation2 + $0x48] sm:$0xff]
    %v74 = vld [vmem:[#allocation5] sm:$0xff]
    %v75 = vadd.f32 %v64, %v74
    %v76 = vadd.f32 %v65, %v74
    %v77 = vadd.f32 %v66, %v74
    %v78 = vadd.f32 %v67, %v74
    %v79 = vadd.f32 %v68, %v74
    %v80 = vadd.f32 %v69, %v74
    %v81 = vadd.f32 %v70, %v74
    %v82 = vadd.f32 %v71, %v74
    %v83 = vadd.f32 %v72, %v74
    %v84 = vadd.f32 %v73, %v74
    %v85 = vpack.c.bf16 %v76, %v75
    %v86 = vpack.c.bf16 %v78, %v77
    %v87 = vpack.c.bf16 %v80, %v79
    %v88 = vpack.c.bf16 %v82, %v81
    %v89 = vpack.c.bf16 %v84, %v83
    %v90 = vld [vmem:[#allocation7] sm:$0xf]
    %v91 = vld [vmem:[#allocation7 + $0x4] sm:$0xf]
    %v92 = vld [vmem:[#allocation7 + $0x8] sm:$0xf]
    %v93 = vld [vmem:[#allocation7 + $0xc] sm:$0xf]
    %v94 = vld [vmem:[%s3] sm:$0x1]
    %v96 = vlaneseq
    %v97 = vshrl.u32 %v96, 7
    %v98 = vsub.s32 0, %v97
    %v99 = vrot.slane %v94, %v98
    %v105 = vunpack.c.l.b16 %v90
    %v106 = vunpack.c.l.b16 %v91
    %v107 = vunpack.c.l.b16 %v92
    %v108 = vunpack.c.l.b16 %v93
    %v109 = vpack.c.b16 %v106, %v105
    %v110 = vpack.c.b16 %v108, %v107
    %vm113 = vcmask 261120
    %v115 = vsel %vm113, %v85, 0
    %v118 = vsel %vm113, %v86, 0
    %v121 = vsel %vm113, %v87, 0
    %v124 = vsel %vm113, %v88, 0
    %v127 = vsel %vm113, %v89, 0
    %129 = vmatprep.subr.bf16.mxu0 0
    %130 = vmatpush1.bf16.msra.mxu0 %v109
    %131 = vmatprep.subr.bf16.mxu0 0
    %132 = vmatpush1.bf16.msra.mxu0 %v110
    %133 = vmatprep.subr.bf16.mxu0 0
    %134 = vmatpush1.bf16.msra.mxu0 0
    %135 = vmatprep.subr.bf16.mxu0 0
    %136 = vmatpush1.bf16.msra.mxu0 0
    %137 = vmatprep.subr.bf16.mxu0 0
    %138 = vmatpush1.bf16.msra.mxu0 0
    %139 = vmatprep.subr.bf16.mxu0 0
    %140 = vmatpush1.bf16.msra.mxu0 0
    %141 = vmatprep.subr.bf16.mxu0 0
    %142 = vmatpush1.bf16.msra.mxu0 0
    %143 = vmatprep.subr.bf16.mxu0 0
    %144 = vmatpush1.bf16.msra.mxu0 0
    %145 = vmatprep.subr.bf16.mxu0 0
    %146 = vmatpush1.bf16.msra.mxu0 0
    %147 = vmatprep.subr.bf16.mxu0 0
    %148 = vmatpush1.bf16.msra.mxu0 0
    %149 = vmatprep.subr.bf16.mxu0 0
    %150 = vmatpush1.bf16.msra.mxu0 0
    %151 = vmatprep.subr.bf16.mxu0 0
    %152 = vmatpush1.bf16.msra.mxu0 0
    %153 = vmatprep.subr.bf16.mxu0 0
    %154 = vmatpush1.bf16.msra.mxu0 0
    %155 = vmatprep.subr.bf16.mxu0 0
    %156 = vmatpush1.bf16.msra.mxu0 0
    %157 = vmatprep.subr.bf16.mxu0 0
    %158 = vmatpush1.bf16.msra.mxu0 0
    %159 = vmatprep.subr.bf16.mxu0 0
    %160 = vmatpush1.bf16.msra.mxu0 0
    %161 = vmatprep.mubr.bf16.mxu0 0
    %162 = vmatmul.mubr.bf16.gmra.mrb[0].mxu0 %v115
    %v163 = vpop.f32.mrb[0].mxu0
    %v164 = vadd.f32 %v99, %v163
    %v165 = vpop.f32.mrb[0].mxu0
    %v166 = vpop.f32.mrb[0].mxu0
    %v167 = vadd.f32 %v99, %v166
    %v168 = vpop.f32.mrb[0].mxu0
    %169 = vmatprep.mubr.bf16.mxu0 0
    %170 = vmatmul.mubr.bf16.gmra.mrb[0].mxu0 %v118
    %v171 = vpop.f32.mrb[0].mxu0
    %v172 = vadd.f32 %v99, %v171
    %v173 = vpop.f32.mrb[0].mxu0
    %v174 = vpop.f32.mrb[0].mxu0
    %v175 = vadd.f32 %v99, %v174
    %v176 = vpop.f32.mrb[0].mxu0
    %177 = vmatprep.mubr.bf16.mxu0 0
    %178 = vmatmul.mubr.bf16.gmra.mrb[0].mxu0 %v121
    %v179 = vpop.f32.mrb[0].mxu0
    %v180 = vadd.f32 %v99, %v179
    %v181 = vpop.f32.mrb[0].mxu0
    %v182 = vpop.f32.mrb[0].mxu0
    %v183 = vadd.f32 %v99, %v182
    %v184 = vpop.f32.mrb[0].mxu0
    %185 = vmatprep.mubr.bf16.mxu0 0
    %186 = vmatmul.mubr.bf16.gmra.mrb[0].mxu0 %v124
    %v187 = vpop.f32.mrb[0].mxu0
    %v188 = vadd.f32 %v99, %v187
    %v189 = vpop.f32.mrb[0].mxu0
    %v190 = vpop.f32.mrb[0].mxu0
    %v191 = vadd.f32 %v99, %v190
    %v192 = vpop.f32.mrb[0].mxu0
    %193 = vmatprep.mubr.bf16.mxu0 0
    %194 = vmatmul.mubr.bf16.gmra.mrb[0].mxu0 %v127
    %v195 = vpop.f32.mrb[0].mxu0
    %v196 = vadd.f32 %v99, %v195
    %v197 = vpop.f32.mrb[0].mxu0
    %v198 = vpop.f32.mrb[0].mxu0
    %v199 = vadd.f32 %v99, %v198
    %v200 = vpop.f32.mrb[0].mxu0
    %201 = vdwg.mxu0
    %v202 = vsel %vm113, %v164, 0.0
    %203 = vadd.xlane.f32.xlu0 %v202
    %v204 = vpop.xlane.xlu0 %203
    %v205 = vsel %vm113, %v167, 0.0
    %206 = vadd.xlane.f32.xlu0 %v205
    %v207 = vpop.xlane.xlu0 %206
    %v208 = vsel %vm113, %v172, 0.0
    %209 = vadd.xlane.f32.xlu0 %v208
    %v210 = vpop.xlane.xlu0 %209
    %v211 = vsel %vm113, %v175, 0.0
    %212 = vadd.xlane.f32.xlu0 %v211
    %v213 = vpop.xlane.xlu0 %212
    %v214 = vsel %vm113, %v180, 0.0
    %215 = vadd.xlane.f32.xlu0 %v214
    %v216 = vpop.xlane.xlu0 %215
    %v217 = vsel %vm113, %v183, 0.0
    %218 = vadd.xlane.f32.xlu0 %v217
    %v219 = vpop.xlane.xlu0 %218
    %v220 = vrcp.pop 32.0
    %v221 = vmul.f32 %v204, %v220
    %v222 = vmul.f32 %v207, %v220
    %v223 = vmul.f32 %v210, %v220
    %v224 = vmul.f32 %v213, %v220
    %v225 = vmul.f32 %v216, %v220
    %v226 = vmul.f32 %v219, %v220
    %v227 = vsub.f32 %v164, %v221
    %v228 = vsub.f32 %v167, %v222
    %v229 = vsub.f32 %v172, %v223
    %v230 = vsub.f32 %v175, %v224
    %v231 = vsub.f32 %v180, %v225
    %v232 = vsub.f32 %v183, %v226
    %v233 = vmul.f32 %v227, %v227
    %v234 = vmul.f32 %v228, %v228
    %v235 = vmul.f32 %v229, %v229
    %v236 = vmul.f32 %v230, %v230
    %v237 = vmul.f32 %v231, %v231
    %v238 = vmul.f32 %v232, %v232
    %v239 = vsel %vm113, %v233, 0.0
    %240 = vadd.xlane.f32.xlu0 %v239
    %v241 = vpop.xlane.xlu0 %240
    %v242 = vsel %vm113, %v234, 0.0
    %243 = vadd.xlane.f32.xlu0 %v242
    %v244 = vpop.xlane.xlu0 %243
    %v245 = vsel %vm113, %v235, 0.0
    %246 = vadd.xlane.f32.xlu0 %v245
    %v247 = vpop.xlane.xlu0 %246
    %v248 = vsel %vm113, %v236, 0.0
    %249 = vadd.xlane.f32.xlu0 %v248
    %v250 = vpop.xlane.xlu0 %249
    %v251 = vsel %vm113, %v237, 0.0
    %252 = vadd.xlane.f32.xlu0 %v251
    %v253 = vpop.xlane.xlu0 %252
    %v254 = vsel %vm113, %v238, 0.0
    %255 = vadd.xlane.f32.xlu0 %v254
    %v256 = vpop.xlane.xlu0 %255
    %v257 = vmul.f32 %v241, %v220
    %v258 = vmul.f32 %v244, %v220
    %v259 = vmul.f32 %v247, %v220
    %v260 = vmul.f32 %v250, %v220
    %v261 = vmul.f32 %v253, %v220
    %v262 = vmul.f32 %v256, %v220
    %v263 = vadd.f32 %v257, 1e-05
    %v264 = vadd.f32 %v258, 1e-05
    %v265 = vadd.f32 %v259, 1e-05
    %v266 = vadd.f32 %v260, 1e-05
    %v267 = vadd.f32 %v261, 1e-05
    %v268 = vadd.f32 %v262, 1e-05
    %v269 = vrsqrt.pop %v263
    %v270 = vrsqrt.pop %v264
    %v271 = vrsqrt.pop %v265
    %v272 = vrsqrt.pop %v266
    %v273 = vrsqrt.pop %v267
    %v274 = vrsqrt.pop %v268
    %v275 = vmul.f32 %v227, %v269
    %v276 = vmul.f32 %v228, %v270
    %v277 = vmul.f32 %v229, %v271
    %v278 = vmul.f32 %v230, %v272
    %v279 = vmul.f32 %v231, %v273
    %v280 = vmul.f32 %v232, %v274
    %v281 = vld [vmem:[%s4] sm:$0x1]
    %v283 = vlaneseq
    %v284 = vshrl.u32 %v283, 7
    %v285 = vsub.s32 0, %v284
    %v286 = vrot.slane %v281, %v285
    %v288 = vmul.f32 %v275, %v286
    %v289 = vmul.f32 %v276, %v286
    %v290 = vmul.f32 %v277, %v286
    %v291 = vmul.f32 %v278, %v286
    %v292 = vmul.f32 %v279, %v286
    %v293 = vmul.f32 %v280, %v286
    %v294 = vld [vmem:[%s5] sm:$0x1]
    %v296 = vlaneseq
    %v297 = vshrl.u32 %v296, 7
    %v298 = vsub.s32 0, %v297
    %v299 = vrot.slane %v294, %v298
    %v301 = vadd.f32 %v288, %v299
    %v302 = vadd.f32 %v289, %v299
    %v303 = vadd.f32 %v290, %v299
    %v304 = vadd.f32 %v291, %v299
    %v305 = vadd.f32 %v292, %v299
    %v306 = vadd.f32 %v293, %v299
    %311 = vrot.lane.b32.xlu0 %v188, 64
    %v312 = vpop.permute.xlu0 %311
    %313 = vrot.lane.b32.xlu0 %v191, 64
    %v314 = vpop.permute.xlu0 %313
    %315 = vrot.lane.b32.xlu0 %v196, 64
    %v316 = vpop.permute.xlu0 %315
    %317 = vrot.lane.b32.xlu0 %v199, 64
    %v318 = vpop.permute.xlu0 %317
    %v323 = vsel %vm113, %v312, 0.0
    %324 = vadd.xlane.f32.xlu0 %v323
    %v325 = vpop.xlane.xlu0 %324
    %v326 = vsel %vm113, %v314, 0.0
    %327 = vadd.xlane.f32.xlu0 %v326
    %v328 = vpop.xlane.xlu0 %327
    %v329 = vsel %vm113, %v316, 0.0
    %330 = vadd.xlane.f32.xlu0 %v329
    %v331 = vpop.xlane.xlu0 %330
    %v332 = vsel %vm113, %v318, 0.0
    %333 = vadd.xlane.f32.xlu0 %v332
    %v334 = vpop.xlane.xlu0 %333
    %v335 = vmul.f32 %v325, %v220
    %v336 = vmul.f32 %v328, %v220
    %v337 = vmul.f32 %v331, %v220
    %v338 = vmul.f32 %v334, %v220
    %v339 = vsub.f32 %v188, %v335
    %v340 = vsub.f32 %v191, %v336
    %v341 = vsub.f32 %v196, %v337
    %v342 = vsub.f32 %v199, %v338
    %v343 = vmul.f32 %v339, %v339
    %v344 = vmul.f32 %v340, %v340
    %v345 = vmul.f32 %v341, %v341
    %v346 = vmul.f32 %v342, %v342
    %351 = vrot.lane.b32.xlu0 %v343, 64
    %v352 = vpop.permute.xlu0 %351
    %353 = vrot.lane.b32.xlu0 %v344, 64
    %v354 = vpop.permute.xlu0 %353
    %355 = vrot.lane.b32.xlu0 %v345, 64
    %v356 = vpop.permute.xlu0 %355
    %357 = vrot.lane.b32.xlu0 %v346, 64
    %v358 = vpop.permute.xlu0 %357
    %v363 = vsel %vm113, %v352, 0.0
    %364 = vadd.xlane.f32.xlu0 %v363
    %v365 = vpop.xlane.xlu0 %364
    %v366 = vsel %vm113, %v354, 0.0
    %367 = vadd.xlane.f32.xlu0 %v366
    %v368 = vpop.xlane.xlu0 %367
    %v369 = vsel %vm113, %v356, 0.0
    %370 = vadd.xlane.f32.xlu0 %v369
    %v371 = vpop.xlane.xlu0 %370
    %v372 = vsel %vm113, %v358, 0.0
    %373 = vadd.xlane.f32.xlu0 %v372
    %v374 = vpop.xlane.xlu0 %373
    %v375 = vmul.f32 %v365, %v220
    %v376 = vmul.f32 %v368, %v220
    %v377 = vmul.f32 %v371, %v220
    %v378 = vmul.f32 %v374, %v220
    %v379 = vadd.f32 %v375, 1e-05
    %v380 = vadd.f32 %v376, 1e-05
    %v381 = vadd.f32 %v377, 1e-05
    %v382 = vadd.f32 %v378, 1e-05
    %v383 = vrsqrt.pop %v379
    %v384 = vrsqrt.pop %v380
    %v385 = vrsqrt.pop %v381
    %v386 = vrsqrt.pop %v382
    %v387 = vmul.f32 %v339, %v383
    %v388 = vmul.f32 %v340, %v384
    %v389 = vmul.f32 %v341, %v385
    %v390 = vmul.f32 %v342, %v386
    %391 = vrot.lane.b32.xlu0 %v286, 64
    %v392 = vpop.permute.xlu0 %391
    %v394 = vmul.f32 %v387, %v392
    %v395 = vmul.f32 %v388, %v392
    %v396 = vmul.f32 %v389, %v392
    %v397 = vmul.f32 %v390, %v392
    %398 = vrot.lane.b32.xlu0 %v299, 64
    %v399 = vpop.permute.xlu0 %398
    %v401 = vadd.f32 %v394, %v399
    %v402 = vadd.f32 %v395, %v399
    %v403 = vadd.f32 %v396, %v399
    %v404 = vadd.f32 %v397, %v399
    %v405 = vmul.f32 %v401, 0.17677669
    %v406 = vmul.f32 %v402, 0.17677669
    %v407 = vmul.f32 %v403, 0.17677669
    %v408 = vmul.f32 %v404, 0.17677669
    %v409 = vpack.c.bf16 %v406, %v405
    %v410 = vpack.c.bf16 %v408, %v407
    %v411 = vpack.c.bf16 %v302, %v301
    %v412 = vpack.c.bf16 %v304, %v303
    %v413 = vpack.c.bf16 %v306, %v305
    %v414 = vpack.c.bf16 %v167, %v164
    %v415 = vpack.c.bf16 %v175, %v172
    %v416 = vpack.c.bf16 %v183, %v180
    %419 = vrot.lane.b32.xlu0 %v409, 64
    %v420 = vpop.permute.xlu0 %419
    %421 = vrot.lane.b32.xlu0 %v410, 64
    %v422 = vpop.permute.xlu0 %421
    %v424 = vsel %vm113, %v420, 0
    %v427 = vsel %vm113, %v422, 0
    %v430 = vsel %vm113, %v411, 0
    %432 = vmatprep.subr.bf16.mxu0 0
    %433 = vmatpush1.bf16.xpose.msra.mxu0 %v430
    %434 = vmatprep.subr.bf16.mxu0 0
    %435 = vmatpush1.bf16.xpose.msra.mxu0 0
    %436 = vmatprep.subr.bf16.mxu0 0
    %437 = vmatpush1.bf16.xpose.msra.mxu0 0
    %438 = vmatprep.subr.bf16.mxu0 0
    %439 = vmatpush1.bf16.xpose.msra.mxu0 0
    %440 = vmatprep.subr.bf16.mxu0 0
    %441 = vmatpush1.bf16.xpose.msra.mxu0 0
    %442 = vmatprep.subr.bf16.mxu0 0
    %443 = vmatpush1.bf16.xpose.msra.mxu0 0
    %444 = vmatprep.subr.bf16.mxu0 0
    %445 = vmatpush1.bf16.xpose.msra.mxu0 0
    %446 = vmatprep.subr.bf16.mxu0 0
    %447 = vmatpush1.bf16.xpose.msra.mxu0 0
    %448 = vmatprep.subr.bf16.mxu0 0
    %449 = vmatpush1.bf16.xpose.msra.mxu0 0
    %450 = vmatprep.subr.bf16.mxu0 0
    %451 = vmatpush1.bf16.xpose.msra.mxu0 0
    %452 = vmatprep.subr.bf16.mxu0 0
    %453 = vmatpush1.bf16.xpose.msra.mxu0 0
    %454 = vmatprep.subr.bf16.mxu0 0
    %455 = vmatpush1.bf16.xpose.msra.mxu0 0
    %456 = vmatprep.subr.bf16.mxu0 0
    %457 = vmatpush1.bf16.xpose.msra.mxu0 0
    %458 = vmatprep.subr.bf16.mxu0 0
    %459 = vmatpush1.bf16.xpose.msra.mxu0 0
    %460 = vmatprep.subr.bf16.mxu0 0
    %461 = vmatpush1.bf16.xpose.msra.mxu0 0
    %462 = vmatprep.subr.bf16.mxu0 0
    %463 = vmatpush1.bf16.xpose.msra.mxu0 0
    %464 = vmatprep.mubr.bf16.mxu0 0
    %465 = vmatmul.mubr.bf16.gmra.mrb[0].mxu0 %v424
    %v466 = vpop.f32.mrb[0].mxu0
    %v467 = vadd.f32 0.0, %v466
    %v468 = vpop.f32.mrb[0].mxu0
    %v469 = vpop.f32.mrb[0].mxu0
    %v470 = vadd.f32 0.0, %v469
    %v471 = vpop.f32.mrb[0].mxu0
    %472 = vmatprep.mubr.bf16.mxu0 0
    %473 = vmatmul.mubr.bf16.gmra.mrb[0].mxu0 %v427
    %v474 = vpop.f32.mrb[0].mxu0
    %v475 = vadd.f32 0.0, %v474
    %v476 = vpop.f32.mrb[0].mxu0
    %v477 = vpop.f32.mrb[0].mxu0
    %v478 = vadd.f32 0.0, %v477
    %v479 = vpop.f32.mrb[0].mxu0
    %480 = vdwg.mxu0
    %vm481 = vcmask 130048
    %v482 = vsel %vm481, %v467, -inf
    %483 = vmax.xlane.f32.xlu0 %v482
    %v484 = vpop.xlane.xlu0 %483
    %v485 = vsel %vm481, %v470, -inf
    %486 = vmax.xlane.f32.xlu0 %v485
    %v487 = vpop.xlane.xlu0 %486
    %v488 = vsel %vm481, %v475, -inf
    %489 = vmax.xlane.f32.xlu0 %v488
    %v490 = vpop.xlane.xlu0 %489
    %v491 = vsel %vm481, %v478, -inf
    %492 = vmax.xlane.f32.xlu0 %v491
    %v493 = vpop.xlane.xlu0 %492
    %v494 = vsub.f32 %v467, %v484
    %v495 = vsub.f32 %v470, %v487
    %v496 = vsub.f32 %v475, %v490
    %v497 = vsub.f32 %v478, %v493
    %v498 = vmul.f32 %v494, 1.442695
    %v499 = vpow.pop %v498
    %v500 = vmul.f32 %v495, 1.442695
    %v501 = vpow.pop %v500
    %v502 = vmul.f32 %v496, 1.442695
    %v503 = vpow.pop %v502
    %v504 = vmul.f32 %v497, 1.442695
    %v505 = vpow.pop %v504
    %v506 = vsel %vm481, %v499, 0.0
    %507 = vadd.xlane.f32.xlu0 %v506
    %v508 = vpop.xlane.xlu0 %507
    %v509 = vsel %vm481, %v501, 0.0
    %510 = vadd.xlane.f32.xlu0 %v509
    %v511 = vpop.xlane.xlu0 %510
    %v512 = vsel %vm481, %v503, 0.0
    %513 = vadd.xlane.f32.xlu0 %v512
    %v514 = vpop.xlane.xlu0 %513
    %v515 = vsel %vm481, %v505, 0.0
    %516 = vadd.xlane.f32.xlu0 %v515
    %v517 = vpop.xlane.xlu0 %516
    %v518 = vpack.c.bf16 %v501, %v499
    %v519 = vpack.c.bf16 %v505, %v503
    %521 = vrot.lane.b32.xlu0 %v414, 96
    %v522 = vpop.permute.xlu0 %521
    %v525 = vsel %vm481, %v518, 0
    %v528 = vsel %vm481, %v519, 0
    %530 = vmatprep.subr.bf16.mxu0 0
    %531 = vmatpush1.bf16.msra.mxu0 %v522
    %532 = vmatprep.subr.bf16.mxu0 0
    %533 = vmatpush1.bf16.msra.mxu0 0
    %534 = vmatprep.subr.bf16.mxu0 0
    %535 = vmatpush1.bf16.msra.mxu0 0
    %536 = vmatprep.subr.bf16.mxu0 0
    %537 = vmatpush1.bf16.msra.mxu0 0
    %538 = vmatprep.subr.bf16.mxu0 0
    %539 = vmatpush1.bf16.msra.mxu0 0
    %540 = vmatprep.subr.bf16.mxu0 0
    %541 = vmatpush1.bf16.msra.mxu0 0
    %542 = vmatprep.subr.bf16.mxu0 0
    %543 = vmatpush1.bf16.msra.mxu0 0
    %544 = vmatprep.subr.bf16.mxu0 0
    %545 = vmatpush1.bf16.msra.mxu0 0
    %546 = vmatprep.subr.bf16.mxu0 0
    %547 = vmatpush1.bf16.msra.mxu0 0
    %548 = vmatprep.subr.bf16.mxu0 0
    %549 = vmatpush1.bf16.msra.mxu0 0
    %550 = vmatprep.subr.bf16.mxu0 0
    %551 = vmatpush1.bf16.msra.mxu0 0
    %552 = vmatprep.subr.bf16.mxu0 0
    %553 = vmatpush1.bf16.msra.mxu0 0
    %554 = vmatprep.subr.bf16.mxu0 0
    %555 = vmatpush1.bf16.msra.mxu0 0
    %556 = vmatprep.subr.bf16.mxu0 0
    %557 = vmatpush1.bf16.msra.mxu0 0
    %558 = vmatprep.subr.bf16.mxu0 0
    %559 = vmatpush1.bf16.msra.mxu0 0
    %560 = vmatprep.subr.bf16.mxu0 0
    %561 = vmatpush1.bf16.msra.mxu0 0
    %562 = vmatprep.mubr.bf16.mxu0 0
    %563 = vmatmul.mubr.bf16.gmra.mrb[0].mxu0 %v525
    %v564 = vpop.f32.mrb[0].mxu0
    %v565 = vadd.f32 0.0, %v564
    %v566 = vpop.f32.mrb[0].mxu0
    %v567 = vpop.f32.mrb[0].mxu0
    %v568 = vadd.f32 0.0, %v567
    %v569 = vpop.f32.mrb[0].mxu0
    %570 = vmatprep.mubr.bf16.mxu0 0
    %571 = vmatmul.mubr.bf16.gmra.mrb[0].mxu0 %v528
    %v572 = vpop.f32.mrb[0].mxu0
    %v573 = vadd.f32 0.0, %v572
    %v574 = vpop.f32.mrb[0].mxu0
    %v575 = vpop.f32.mrb[0].mxu0
    %v576 = vadd.f32 0.0, %v575
    %v577 = vpop.f32.mrb[0].mxu0
    %578 = vdwg.mxu0
    %v579 = vrcp.pop %v508
    %v580 = vrcp.pop %v511
    %v581 = vrcp.pop %v514
    %v582 = vrcp.pop %v517
    %v583 = vmul.f32 %v565, %v579
    %v584 = vmul.f32 %v568, %v580
    %v585 = vmul.f32 %v573, %v581
    %v586 = vmul.f32 %v576, %v582
    %591 = vrot.lane.b32.xlu0 %v583, 96
    %v592 = vpop.permute.xlu0 %591
    %593 = vrot.lane.b32.xlu0 %v584, 96
    %v594 = vpop.permute.xlu0 %593
    %595 = vrot.lane.b32.xlu0 %v585, 96
    %v596 = vpop.permute.xlu0 %595
    %597 = vrot.lane.b32.xlu0 %v586, 96
    %v598 = vpop.permute.xlu0 %597
    %v603 = vsub.f32 %v188, %v592
    %v604 = vsub.f32 %v191, %v594
    %v605 = vsub.f32 %v196, %v596
    %v606 = vsub.f32 %v199, %v598
    %v607 = vmul.f32 %v603, %v603
    %v608 = vmul.f32 %v604, %v604
    %v609 = vmul.f32 %v605, %v605
    %v610 = vmul.f32 %v606, %v606
    %615 = vrot.lane.b32.xlu0 %v607, 32
    %v616 = vpop.permute.xlu0 %615
    %617 = vrot.lane.b32.xlu0 %v608, 32
    %v618 = vpop.permute.xlu0 %617
    %619 = vrot.lane.b32.xlu0 %v609, 32
    %v620 = vpop.permute.xlu0 %619
    %621 = vrot.lane.b32.xlu0 %v610, 32
    %v622 = vpop.permute.xlu0 %621
    %v627 = vsel %vm113, %v616, 0.0
    %628 = vadd.xlane.f32.xlu0 %v627
    %v629 = vpop.xlane.xlu0 %628
    %v630 = vsel %vm113, %v618, 0.0
    %631 = vadd.xlane.f32.xlu0 %v630
    %v632 = vpop.xlane.xlu0 %631
    %v633 = vsel %vm113, %v620, 0.0
    %634 = vadd.xlane.f32.xlu0 %v633
    %v635 = vpop.xlane.xlu0 %634
    %v636 = vsel %vm113, %v622, 0.0
    %637 = vadd.xlane.f32.xlu0 %v636
    %v638 = vpop.xlane.xlu0 %637
    %v639 = vrot.slane %v629, 4
    %v640 = vadd.f32 %v629, %v639
    %v641 = vrot.slane %v640, 2
    %v642 = vadd.f32 %v640, %v641
    %v643 = vrot.slane %v642, 1
    %v644 = vadd.f32 %v642, %v643
    %v645 = vrot.slane %v632, 4
    %v646 = vadd.f32 %v632, %v645
    %v647 = vrot.slane %v646, 2
    %v648 = vadd.f32 %v646, %v647
    %v649 = vrot.slane %v648, 1
    %v650 = vadd.f32 %v648, %v649
    %v651 = vrot.slane %v635, 4
    %v652 = vadd.f32 %v635, %v651
    %v653 = vrot.slane %v652, 2
    %v654 = vadd.f32 %v652, %v653
    %v655 = vrot.slane %v654, 1
    %v656 = vadd.f32 %v654, %v655
    %v657 = vrot.slane %v638, 4
    %v658 = vadd.f32 %v638, %v657
    %v659 = vrot.slane %v658, 2
    %v660 = vadd.f32 %v658, %v659
    %v661 = vrot.slane %v660, 1
    %v662 = vadd.f32 %v660, %v661
    %v663 = vsub.f32 0.0, %v644
    %v664 = vsub.f32 0.0, %v650
    %v665 = vsub.f32 0.0, %v656
    %v666 = vsub.f32 0.0, %v662
    %v667 = vmul.f32 %v663, 0.0625
    %v668 = vmul.f32 %v664, 0.0625
    %v669 = vmul.f32 %v665, 0.0625
    %v670 = vmul.f32 %v666, 0.0625
    %vm675 = vcmask 1041409
    %v676 = vsel %vm675, %v668, %v667
    %vm677 = vcmask 1042434
    %v678 = vsel %vm677, %v669, %v676
    %vm679 = vcmask 1043459
    %v680 = vsel %vm679, %v670, %v678
    %vm682 = vcmask 3072
    %683 = vst.msk [vmem:[#allocation8] sm:$0xf] %vm682, %v680
    %v685 = vsel %vm113, %v412, 0
    %687 = vmatprep.subr.bf16.mxu0 0
    %688 = vmatpush1.bf16.xpose.msra.mxu0 %v685
    %689 = vmatprep.subr.bf16.mxu0 0
    %690 = vmatpush1.bf16.xpose.msra.mxu0 0
    %691 = vmatprep.subr.bf16.mxu0 0
    %692 = vmatpush1.bf16.xpose.msra.mxu0 0
    %693 = vmatprep.subr.bf16.mxu0 0
    %694 = vmatpush1.bf16.xpose.msra.mxu0 0
    %695 = vmatprep.subr.bf16.mxu0 0
    %696 = vmatpush1.bf16.xpose.msra.mxu0 0
    %697 = vmatprep.subr.bf16.mxu0 0
    %698 = vmatpush1.bf16.xpose.msra.mxu0 0
    %699 = vmatprep.subr.bf16.mxu0 0
    %700 = vmatpush1.bf16.xpose.msra.mxu0 0
    %701 = vmatprep.subr.bf16.mxu0 0
    %702 = vmatpush1.bf16.xpose.msra.mxu0 0
    %703 = vmatprep.subr.bf16.mxu0 0
    %704 = vmatpush1.bf16.xpose.msra.mxu0 0
    %705 = vmatprep.subr.bf16.mxu0 0
    %706 = vmatpush1.bf16.xpose.msra.mxu0 0
    %707 = vmatprep.subr.bf16.mxu0 0
    %708 = vmatpush1.bf16.xpose.msra.mxu0 0
    %709 = vmatprep.subr.bf16.mxu0 0
    %710 = vmatpush1.bf16.xpose.msra.mxu0 0
    %711 = vmatprep.subr.bf16.mxu0 0
    %712 = vmatpush1.bf16.xpose.msra.mxu0 0
    %713 = vmatprep.subr.bf16.mxu0 0
    %714 = vmatpush1.bf16.xpose.msra.mxu0 0
    %715 = vmatprep.subr.bf16.mxu0 0
    %716 = vmatpush1.bf16.xpose.msra.mxu0 0
    %717 = vmatprep.subr.bf16.mxu0 0
    %718 = vmatpush1.bf16.xpose.msra.mxu0 0
    %719 = vmatprep.mubr.bf16.mxu0 0
    %720 = vmatmul.mubr.bf16.gmra.mrb[0].mxu0 %v424
    %v721 = vpop.f32.mrb[0].mxu0
    %v722 = vadd.f32 0.0, %v721
    %v723 = vpop.f32.mrb[0].mxu0
    %v724 = vpop.f32.mrb[0].mxu0
    %v725 = vadd.f32 0.0, %v724
    %v726 = vpop.f32.mrb[0].mxu0
    %727 = vmatprep.mubr.bf16.mxu0 0
    %728 = vmatmul.mubr.bf16.gmra.mrb[0].mxu0 %v427
    %v729 = vpop.f32.mrb[0].mxu0
    %v730 = vadd.f32 0.0, %v729
    %v731 = vpop.f32.mrb[0].mxu0
    %v732 = vpop.f32.mrb[0].mxu0
    %v733 = vadd.f32 0.0, %v732
    %v734 = vpop.f32.mrb[0].mxu0
    %735 = vdwg.mxu0
    %v736 = vsel %vm481, %v722, -inf
    %737 = vmax.xlane.f32.xlu0 %v736
    %v738 = vpop.xlane.xlu0 %737
    %v739 = vsel %vm481, %v725, -inf
    %740 = vmax.xlane.f32.xlu0 %v739
    %v741 = vpop.xlane.xlu0 %740
    %v742 = vsel %vm481, %v730, -inf
    %743 = vmax.xlane.f32.xlu0 %v742
    %v744 = vpop.xlane.xlu0 %743
    %v745 = vsel %vm481, %v733, -inf
    %746 = vmax.xlane.f32.xlu0 %v745
    %v747 = vpop.xlane.xlu0 %746
    %v748 = vsub.f32 %v722, %v738
    %v749 = vsub.f32 %v725, %v741
    %v750 = vsub.f32 %v730, %v744
    %v751 = vsub.f32 %v733, %v747
    %v752 = vmul.f32 %v748, 1.442695
    %v753 = vpow.pop %v752
    %v754 = vmul.f32 %v749, 1.442695
    %v755 = vpow.pop %v754
    %v756 = vmul.f32 %v750, 1.442695
    %v757 = vpow.pop %v756
    %v758 = vmul.f32 %v751, 1.442695
    %v759 = vpow.pop %v758
    %v760 = vsel %vm481, %v753, 0.0
    %761 = vadd.xlane.f32.xlu0 %v760
    %v762 = vpop.xlane.xlu0 %761
    %v763 = vsel %vm481, %v755, 0.0
    %764 = vadd.xlane.f32.xlu0 %v763
    %v765 = vpop.xlane.xlu0 %764
    %v766 = vsel %vm481, %v757, 0.0
    %767 = vadd.xlane.f32.xlu0 %v766
    %v768 = vpop.xlane.xlu0 %767
    %v769 = vsel %vm481, %v759, 0.0
    %770 = vadd.xlane.f32.xlu0 %v769
    %v771 = vpop.xlane.xlu0 %770
    %v772 = vpack.c.bf16 %v755, %v753
    %v773 = vpack.c.bf16 %v759, %v757
    %775 = vrot.lane.b32.xlu0 %v415, 96
    %v776 = vpop.permute.xlu0 %775
    %v779 = vsel %vm481, %v772, 0
    %v782 = vsel %vm481, %v773, 0
    %784 = vmatprep.subr.bf16.mxu0 0
    %785 = vmatpush1.bf16.msra.mxu0 %v776
    %786 = vmatprep.subr.bf16.mxu0 0
    %787 = vmatpush1.bf16.msra.mxu0 0
    %788 = vmatprep.subr.bf16.mxu0 0
    %789 = vmatpush1.bf16.msra.mxu0 0
    %790 = vmatprep.subr.bf16.mxu0 0
    %791 = vmatpush1.bf16.msra.mxu0 0
    %792 = vmatprep.subr.bf16.mxu0 0
    %793 = vmatpush1.bf16.msra.mxu0 0
    %794 = vmatprep.subr.bf16.mxu0 0
    %795 = vmatpush1.bf16.msra.mxu0 0
    %796 = vmatprep.subr.bf16.mxu0 0
    %797 = vmatpush1.bf16.msra.mxu0 0
    %798 = vmatprep.subr.bf16.mxu0 0
    %799 = vmatpush1.bf16.msra.mxu0 0
    %800 = vmatprep.subr.bf16.mxu0 0
    %801 = vmatpush1.bf16.msra.mxu0 0
    %802 = vmatprep.subr.bf16.mxu0 0
    %803 = vmatpush1.bf16.msra.mxu0 0
    %804 = vmatprep.subr.bf16.mxu0 0
    %805 = vmatpush1.bf16.msra.mxu0 0
    %806 = vmatprep.subr.bf16.mxu0 0
    %807 = vmatpush1.bf16.msra.mxu0 0
    %808 = vmatprep.subr.bf16.mxu0 0
    %809 = vmatpush1.bf16.msra.mxu0 0
    %810 = vmatprep.subr.bf16.mxu0 0
    %811 = vmatpush1.bf16.msra.mxu0 0
    %812 = vmatprep.subr.bf16.mxu0 0
    %813 = vmatpush1.bf16.msra.mxu0 0
    %814 = vmatprep.subr.bf16.mxu0 0
    %815 = vmatpush1.bf16.msra.mxu0 0
    %816 = vmatprep.mubr.bf16.mxu0 0
    %817 = vmatmul.mubr.bf16.gmra.mrb[0].mxu0 %v779
    %v818 = vpop.f32.mrb[0].mxu0
    %v819 = vadd.f32 0.0, %v818
    %v820 = vpop.f32.mrb[0].mxu0
    %v821 = vpop.f32.mrb[0].mxu0
    %v822 = vadd.f32 0.0, %v821
    %v823 = vpop.f32.mrb[0].mxu0
    %824 = vmatprep.mubr.bf16.mxu0 0
    %825 = vmatmul.mubr.bf16.gmra.mrb[0].mxu0 %v782
    %v826 = vpop.f32.mrb[0].mxu0
    %v827 = vadd.f32 0.0, %v826
    %v828 = vpop.f32.mrb[0].mxu0
    %v829 = vpop.f32.mrb[0].mxu0
    %v830 = vadd.f32 0.0, %v829
    %v831 = vpop.f32.mrb[0].mxu0
    %832 = vdwg.mxu0
    %v833 = vrcp.pop %v762
    %v834 = vrcp.pop %v765
    %v835 = vrcp.pop %v768
    %v836 = vrcp.pop %v771
    %v837 = vmul.f32 %v819, %v833
    %v838 = vmul.f32 %v822, %v834
    %v839 = vmul.f32 %v827, %v835
    %v840 = vmul.f32 %v830, %v836
    %845 = vrot.lane.b32.xlu0 %v837, 96
    %v846 = vpop.permute.xlu0 %845
    %847 = vrot.lane.b32.xlu0 %v838, 96
    %v848 = vpop.permute.xlu0 %847
    %849 = vrot.lane.b32.xlu0 %v839, 96
    %v850 = vpop.permute.xlu0 %849
    %851 = vrot.lane.b32.xlu0 %v840, 96
    %v852 = vpop.permute.xlu0 %851
    %v857 = vsub.f32 %v188, %v846
    %v858 = vsub.f32 %v191, %v848
    %v859 = vsub.f32 %v196, %v850
    %v860 = vsub.f32 %v199, %v852
    %v861 = vmul.f32 %v857, %v857
    %v862 = vmul.f32 %v858, %v858
    %v863 = vmul.f32 %v859, %v859
    %v864 = vmul.f32 %v860, %v860
    %869 = vrot.lane.b32.xlu0 %v861, 32
    %v870 = vpop.permute.xlu0 %869
    %871 = vrot.lane.b32.xlu0 %v862, 32
    %v872 = vpop.permute.xlu0 %871
    %873 = vrot.lane.b32.xlu0 %v863, 32
    %v874 = vpop.permute.xlu0 %873
    %875 = vrot.lane.b32.xlu0 %v864, 32
    %v876 = vpop.permute.xlu0 %875
    %v881 = vsel %vm113, %v870, 0.0
    %882 = vadd.xlane.f32.xlu0 %v881
    %v883 = vpop.xlane.xlu0 %882
    %v884 = vsel %vm113, %v872, 0.0
    %885 = vadd.xlane.f32.xlu0 %v884
    %v886 = vpop.xlane.xlu0 %885
    %v887 = vsel %vm113, %v874, 0.0
    %888 = vadd.xlane.f32.xlu0 %v887
    %v889 = vpop.xlane.xlu0 %888
    %v890 = vsel %vm113, %v876, 0.0
    %891 = vadd.xlane.f32.xlu0 %v890
    %v892 = vpop.xlane.xlu0 %891
    %v893 = vrot.slane %v883, 4
    %v894 = vadd.f32 %v883, %v893
    %v895 = vrot.slane %v894, 2
    %v896 = vadd.f32 %v894, %v895
    %v897 = vrot.slane %v896, 1
    %v898 = vadd.f32 %v896, %v897
    %v899 = vrot.slane %v886, 4
    %v900 = vadd.f32 %v886, %v899
    %v901 = vrot.slane %v900, 2
    %v902 = vadd.f32 %v900, %v901
    %v903 = vrot.slane %v902, 1
    %v904 = vadd.f32 %v902, %v903
    %v905 = vrot.slane %v889, 4
    %v906 = vadd.f32 %v889, %v905
    %v907 = vrot.slane %v906, 2
    %v908 = vadd.f32 %v906, %v907
    %v909 = vrot.slane %v908, 1
    %v910 = vadd.f32 %v908, %v909
    %v911 = vrot.slane %v892, 4
    %v912 = vadd.f32 %v892, %v911
    %v913 = vrot.slane %v912, 2
    %v914 = vadd.f32 %v912, %v913
    %v915 = vrot.slane %v914, 1
    %v916 = vadd.f32 %v914, %v915
    %v917 = vsub.f32 0.0, %v898
    %v918 = vsub.f32 0.0, %v904
    %v919 = vsub.f32 0.0, %v910
    %v920 = vsub.f32 0.0, %v916
    %v921 = vmul.f32 %v917, 0.0625
    %v922 = vmul.f32 %v918, 0.0625
    %v923 = vmul.f32 %v919, 0.0625
    %v924 = vmul.f32 %v920, 0.0625
    %v929 = vsel %vm675, %v922, %v921
    %v930 = vsel %vm677, %v923, %v929
    %v931 = vsel %vm679, %v924, %v930
    %vm933 = vcmask 11272
    %934 = vst.msk [vmem:[#allocation8] sm:$0xf] %vm933, %v931
    %v936 = vsel %vm113, %v413, 0
    %938 = vmatprep.subr.bf16.mxu0 0
    %939 = vmatpush1.bf16.xpose.msra.mxu0 %v936
    %940 = vmatprep.subr.bf16.mxu0 0
    %941 = vmatpush1.bf16.xpose.msra.mxu0 0
    %942 = vmatprep.subr.bf16.mxu0 0
    %943 = vmatpush1.bf16.xpose.msra.mxu0 0
    %944 = vmatprep.subr.bf16.mxu0 0
    %945 = vmatpush1.bf16.xpose.msra.mxu0 0
    %946 = vmatprep.subr.bf16.mxu0 0
    %947 = vmatpush1.bf16.xpose.msra.mxu0 0
    %948 = vmatprep.subr.bf16.mxu0 0
    %949 = vmatpush1.bf16.xpose.msra.mxu0 0
    %950 = vmatprep.subr.bf16.mxu0 0
    %951 = vmatpush1.bf16.xpose.msra.mxu0 0
    %952 = vmatprep.subr.bf16.mxu0 0
    %953 = vmatpush1.bf16.xpose.msra.mxu0 0
    %954 = vmatprep.subr.bf16.mxu0 0
    %955 = vmatpush1.bf16.xpose.msra.mxu0 0
    %956 = vmatprep.subr.bf16.mxu0 0
    %957 = vmatpush1.bf16.xpose.msra.mxu0 0
    %958 = vmatprep.subr.bf16.mxu0 0
    %959 = vmatpush1.bf16.xpose.msra.mxu0 0
    %960 = vmatprep.subr.bf16.mxu0 0
    %961 = vmatpush1.bf16.xpose.msra.mxu0 0
    %962 = vmatprep.subr.bf16.mxu0 0
    %963 = vmatpush1.bf16.xpose.msra.mxu0 0
    %964 = vmatprep.subr.bf16.mxu0 0
    %965 = vmatpush1.bf16.xpose.msra.mxu0 0
    %966 = vmatprep.subr.bf16.mxu0 0
    %967 = vmatpush1.bf16.xpose.msra.mxu0 0
    %968 = vmatprep.subr.bf16.mxu0 0
    %969 = vmatpush1.bf16.xpose.msra.mxu0 0
    %970 = vmatprep.mubr.bf16.mxu0 0
    %971 = vmatmul.mubr.bf16.gmra.mrb[0].mxu0 %v424
    %v972 = vpop.f32.mrb[0].mxu0
    %v973 = vadd.f32 0.0, %v972
    %v974 = vpop.f32.mrb[0].mxu0
    %v975 = vpop.f32.mrb[0].mxu0
    %v976 = vadd.f32 0.0, %v975
    %v977 = vpop.f32.mrb[0].mxu0
    %978 = vmatprep.mubr.bf16.mxu0 0
    %979 = vmatmul.mubr.bf16.gmra.mrb[0].mxu0 %v427
    %v980 = vpop.f32.mrb[0].mxu0
    %v981 = vadd.f32 0.0, %v980
    %v982 = vpop.f32.mrb[0].mxu0
    %v983 = vpop.f32.mrb[0].mxu0
    %v984 = vadd.f32 0.0, %v983
    %v985 = vpop.f32.mrb[0].mxu0
    %986 = vdwg.mxu0
    %v987 = vsel %vm481, %v973, -inf
    %988 = vmax.xlane.f32.xlu0 %v987
    %v989 = vpop.xlane.xlu0 %988
    %v990 = vsel %vm481, %v976, -inf
    %991 = vmax.xlane.f32.xlu0 %v990
    %v992 = vpop.xlane.xlu0 %991
    %v993 = vsel %vm481, %v981, -inf
    %994 = vmax.xlane.f32.xlu0 %v993
    %v995 = vpop.xlane.xlu0 %994
    %v996 = vsel %vm481, %v984, -inf
    %997 = vmax.xlane.f32.xlu0 %v996
    %v998 = vpop.xlane.xlu0 %997
    %v999 = vsub.f32 %v973, %v989
    %v1000 = vsub.f32 %v976, %v992
    %v1001 = vsub.f32 %v981, %v995
    %v1002 = vsub.f32 %v984, %v998
    %v1003 = vmul.f32 %v999, 1.442695
    %v1004 = vpow.pop %v1003
    %v1005 = vmul.f32 %v1000, 1.442695
    %v1006 = vpow.pop %v1005
    %v1007 = vmul.f32 %v1001, 1.442695
    %v1008 = vpow.pop %v1007
    %v1009 = vmul.f32 %v1002, 1.442695
    %v1010 = vpow.pop %v1009
    %v1011 = vsel %vm481, %v1004, 0.0
    %1012 = vadd.xlane.f32.xlu0 %v1011
    %v1013 = vpop.xlane.xlu0 %1012
    %v1014 = vsel %vm481, %v1006, 0.0
    %1015 = vadd.xlane.f32.xlu0 %v1014
    %v1016 = vpop.xlane.xlu0 %1015
    %v1017 = vsel %vm481, %v1008, 0.0
    %1018 = vadd.xlane.f32.xlu0 %v1017
    %v1019 = vpop.xlane.xlu0 %1018
    %v1020 = vsel %vm481, %v1010, 0.0
    %1021 = vadd.xlane.f32.xlu0 %v1020
    %v1022 = vpop.xlane.xlu0 %1021
    %v1023 = vpack.c.bf16 %v1006, %v1004
    %v1024 = vpack.c.bf16 %v1010, %v1008
    %1026 = vrot.lane.b32.xlu0 %v416, 96
    %v1027 = vpop.permute.xlu0 %1026
    %v1030 = vsel %vm481, %v1023, 0
    %v1033 = vsel %vm481, %v1024, 0
    %1035 = vmatprep.subr.bf16.mxu0 0
    %1036 = vmatpush1.bf16.msra.mxu0 %v1027
    %1037 = vmatprep.subr.bf16.mxu0 0
    %1038 = vmatpush1.bf16.msra.mxu0 0
    %1039 = vmatprep.subr.bf16.mxu0 0
    %1040 = vmatpush1.bf16.msra.mxu0 0
    %1041 = vmatprep.subr.bf16.mxu0 0
    %1042 = vmatpush1.bf16.msra.mxu0 0
    %1043 = vmatprep.subr.bf16.mxu0 0
    %1044 = vmatpush1.bf16.msra.mxu0 0
    %1045 = vmatprep.subr.bf16.mxu0 0
    %1046 = vmatpush1.bf16.msra.mxu0 0
    %1047 = vmatprep.subr.bf16.mxu0 0
    %1048 = vmatpush1.bf16.msra.mxu0 0
    %1049 = vmatprep.subr.bf16.mxu0 0
    %1050 = vmatpush1.bf16.msra.mxu0 0
    %1051 = vmatprep.subr.bf16.mxu0 0
    %1052 = vmatpush1.bf16.msra.mxu0 0
    %1053 = vmatprep.subr.bf16.mxu0 0
    %1054 = vmatpush1.bf16.msra.mxu0 0
    %1055 = vmatprep.subr.bf16.mxu0 0
    %1056 = vmatpush1.bf16.msra.mxu0 0
    %1057 = vmatprep.subr.bf16.mxu0 0
    %1058 = vmatpush1.bf16.msra.mxu0 0
    %1059 = vmatprep.subr.bf16.mxu0 0
    %1060 = vmatpush1.bf16.msra.mxu0 0
    %1061 = vmatprep.subr.bf16.mxu0 0
    %1062 = vmatpush1.bf16.msra.mxu0 0
    %1063 = vmatprep.subr.bf16.mxu0 0
    %1064 = vmatpush1.bf16.msra.mxu0 0
    %1065 = vmatprep.subr.bf16.mxu0 0
    %1066 = vmatpush1.bf16.msra.mxu0 0
    %1067 = vmatprep.mubr.bf16.mxu0 0
    %1068 = vmatmul.mubr.bf16.gmra.mrb[0].mxu0 %v1030
    %v1069 = vpop.f32.mrb[0].mxu0
    %v1070 = vadd.f32 0.0, %v1069
    %v1071 = vpop.f32.mrb[0].mxu0
    %v1072 = vpop.f32.mrb[0].mxu0
    %v1073 = vadd.f32 0.0, %v1072
    %v1074 = vpop.f32.mrb[0].mxu0
    %1075 = vmatprep.mubr.bf16.mxu0 0
    %1076 = vmatmul.mubr.bf16.gmra.mrb[0].mxu0 %v1033
    %v1077 = vpop.f32.mrb[0].mxu0
    %v1078 = vadd.f32 0.0, %v1077
    %v1079 = vpop.f32.mrb[0].mxu0
    %v1080 = vpop.f32.mrb[0].mxu0
    %v1081 = vadd.f32 0.0, %v1080
    %v1082 = vpop.f32.mrb[0].mxu0
    %1083 = vdwg.mxu0
    %v1084 = vrcp.pop %v1013
    %v1085 = vrcp.pop %v1016
    %v1086 = vrcp.pop %v1019
    %v1087 = vrcp.pop %v1022
    %v1088 = vmul.f32 %v1070, %v1084
    %v1089 = vmul.f32 %v1073, %v1085
    %v1090 = vmul.f32 %v1078, %v1086
    %v1091 = vmul.f32 %v1081, %v1087
    %1096 = vrot.lane.b32.xlu0 %v1088, 96
    %v1097 = vpop.permute.xlu0 %1096
    %1098 = vrot.lane.b32.xlu0 %v1089, 96
    %v1099 = vpop.permute.xlu0 %1098
    %1100 = vrot.lane.b32.xlu0 %v1090, 96
    %v1101 = vpop.permute.xlu0 %1100
    %1102 = vrot.lane.b32.xlu0 %v1091, 96
    %v1103 = vpop.permute.xlu0 %1102
    %v1108 = vsub.f32 %v188, %v1097
    %v1109 = vsub.f32 %v191, %v1099
    %v1110 = vsub.f32 %v196, %v1101
    %v1111 = vsub.f32 %v199, %v1103
    %v1112 = vmul.f32 %v1108, %v1108
    %v1113 = vmul.f32 %v1109, %v1109
    %v1114 = vmul.f32 %v1110, %v1110
    %v1115 = vmul.f32 %v1111, %v1111
    %1120 = vrot.lane.b32.xlu0 %v1112, 32
    %v1121 = vpop.permute.xlu0 %1120
    %1122 = vrot.lane.b32.xlu0 %v1113, 32
    %v1123 = vpop.permute.xlu0 %1122
    %1124 = vrot.lane.b32.xlu0 %v1114, 32
    %v1125 = vpop.permute.xlu0 %1124
    %1126 = vrot.lane.b32.xlu0 %v1115, 32
    %v1127 = vpop.permute.xlu0 %1126
    %v1132 = vsel %vm113, %v1121, 0.0
    %1133 = vadd.xlane.f32.xlu0 %v1132
    %v1134 = vpop.xlane.xlu0 %1133
    %v1135 = vsel %vm113, %v1123, 0.0
    %1136 = vadd.xlane.f32.xlu0 %v1135
    %v1137 = vpop.xlane.xlu0 %1136
    %v1138 = vsel %vm113, %v1125, 0.0
    %1139 = vadd.xlane.f32.xlu0 %v1138
    %v1140 = vpop.xlane.xlu0 %1139
    %v1141 = vsel %vm113, %v1127, 0.0
    %1142 = vadd.xlane.f32.xlu0 %v1141
    %v1143 = vpop.xlane.xlu0 %1142
    %v1144 = vrot.slane %v1134, 4
    %v1145 = vadd.f32 %v1134, %v1144
    %v1146 = vrot.slane %v1145, 2
    %v1147 = vadd.f32 %v1145, %v1146
    %v1148 = vrot.slane %v1147, 1
    %v1149 = vadd.f32 %v1147, %v1148
    %v1150 = vrot.slane %v1137, 4
    %v1151 = vadd.f32 %v1137, %v1150
    %v1152 = vrot.slane %v1151, 2
    %v1153 = vadd.f32 %v1151, %v1152
    %v1154 = vrot.slane %v1153, 1
    %v1155 = vadd.f32 %v1153, %v1154
    %v1156 = vrot.slane %v1140, 4
    %v1157 = vadd.f32 %v1140, %v1156
    %v1158 = vrot.slane %v1157, 2
    %v1159 = vadd.f32 %v1157, %v1158
    %v1160 = vrot.slane %v1159, 1
    %v1161 = vadd.f32 %v1159, %v1160
    %v1162 = vrot.slane %v1143, 4
    %v1163 = vadd.f32 %v1143, %v1162
    %v1164 = vrot.slane %v1163, 2
    %v1165 = vadd.f32 %v1163, %v1164
    %v1166 = vrot.slane %v1165, 1
    %v1167 = vadd.f32 %v1165, %v1166
    %v1168 = vsub.f32 0.0, %v1149
    %v1169 = vsub.f32 0.0, %v1155
    %v1170 = vsub.f32 0.0, %v1161
    %v1171 = vsub.f32 0.0, %v1167
    %v1172 = vmul.f32 %v1168, 0.0625
    %v1173 = vmul.f32 %v1169, 0.0625
    %v1174 = vmul.f32 %v1170, 0.0625
    %v1175 = vmul.f32 %v1171, 0.0625
    %v1180 = vsel %vm675, %v1173, %v1172
    %v1181 = vsel %vm677, %v1174, %v1180
    %v1182 = vsel %vm679, %v1175, %v1181
    %vm1184 = vcmask 19472
    %1185 = vst.msk [vmem:[#allocation8] sm:$0xf] %vm1184, %v1182
    // Predicated region
    $region38: #{tpu_custom_call.1} parent=1 // pred_check
      _
    $region39: #{tpu_custom_call.1} parent=1 // pred_check_branch
      %1187 = sbr.rel (0) target = $region41
    $region40: #{tpu_custom_call.1} parent=1 // pred_region
      %s1189 = ssub.s32 64, 64
      %1190 = vsyncadd [#allocation4], %s1189
      %s1192 = sshll.u32 [#allocation8], 4
      %s1193 = int_to_ptr.vmem [resolvable:$true] %s1192
      %1195 = dma.vmem_to_hbm [thread:$0]  %s1193, 64, %s6, [#allocation4]
    $region41: #{tpu_custom_call.1} parent=1 // pred_fallthru
      _
    // Predicated region
    $region42: #{tpu_custom_call.1} parent=1 // pred_check
      _
    $region43: #{tpu_custom_call.1} parent=1 // pred_check_branch
      %1197 = sbr.rel (0) target = $region45
    $region44: #{tpu_custom_call.1} parent=1 // pred_region
      %1198 = dma.done [#allocation4], 64
    $region45: #{tpu_custom_call.1} parent=1 // pred_fallthru
      _
    %1199 = vsyncpa [#allocation3], 1
    %1200 = vsyncpa [#allocation6], 1
    %1201 = vsyncpa [#allocation4], 1

</llo_original>
